<compile_context>
chip_gen: v6e
topology: v6e:2x2x1
jax: 0.10.0
libtpu: 0.0.40
codegen_flags: <defaults>
</compile_context>

<pallas_src>
import jax
import jax.numpy as jnp
from jax.experimental import pallas as pl
from jax.experimental.pallas import tpu as pltpu

EPS = 1e-6
_MXU_MIN_C = 16                 # at/above this, the 1x1 convs run on the MXU
_LANE_CHUNK = 1024              # lanes per inner compute step (bounds vregs)
_TILE_BUDGET_BYTES = 12 << 20   # budget for the double-buffered x/o blocks
# TODO(synk): set to jnp.bfloat16 on v6e/v7x for ~2x VALU throughput (keep f32
# on v5e or when bit-accuracy vs the f32 reference is required).
_COMPUTE_DTYPE = jnp.float32


def _make_kernel(C, G, lane_chunk, n_chunks, use_mxu, compute_dtype):
    """Kernel over an (SB, tile_p) block holding G images of C channels each."""

    def kernel(x_ref, pv_ref, w_ref, o_ref):
        cd = compute_dtype
        # Per-channel (C, 6) pack: [ln_w, ln_b, b1a, b1g, b2, scale].
        pv = pv_ref[...].astype(jnp.float32)
        lnw, lnb = pv[:, 0:1], pv[:, 1:2]
        b1a = pv[:, 2:3].astype(cd)
        b1g = pv[:, 3:4].astype(cd)
        b2 = pv[:, 4:5].astype(cd)
        scale = pv[:, 5:6]
        # Weight pack (3C, C): rows [0, 2C) = conv1 (a-half, then gate-half),
        # rows [2C, 3C) = conv2.  Loaded / cast once per grid step.
        wall = w_ref[...].astype(cd)
        w1a, w1g, w2 = wall[:C], wall[C:2 * C], wall[2 * C:]

        def process(lane_idx):
            # Static loop over the G images sharing this sublane block.
            for g in range(G):
                r0, r1 = g * C, (g + 1) * C
                xs = x_ref[r0:r1, lane_idx].astype(jnp.float32)

                # LayerNorm (channels_first): per-pixel stats over THIS
                # image's C rows only (segmented; never mixes images).
                u = jnp.mean(xs, axis=0, keepdims=True)
                xc = xs - u
                s = jnp.mean(xc * xc, axis=0, keepdims=True)
                xn = (xc * jax.lax.rsqrt(s + EPS)) * lnw + lnb   # rsqrt -> EUP
                xn = xn.astype(cd)

                if use_mxu:
                    # One fused (2C, C) @ (C, chunk) matmul; the torch.chunk
                    # split is a static row split of the result.
                    y = jnp.dot(wall[:2 * C], xn,
                                preferred_element_type=jnp.float32).astype(cd)
                    a = y[:C] + b1a
                    gt = y[C:] + b1g
                    z = a * gt
                    out = jnp.dot(w2, z,
                                  preferred_element_type=jnp.float32
                                  ).astype(cd) + b2
                else:
                    # Fused conv1: both chunk halves accumulate in a single
                    # pass over xn (each xn row extracted once); bias folded
                    # into the first FMA term.
                    row = xn[0:1]
                    a = w1a[:, 0:1] * row + b1a
                    gt = w1g[:, 0:1] * row + b1g
                    for c in range(1, C):
                        row = xn[c:c + 1]
                        a = a + w1a[:, c:c + 1] * row
                        gt = gt + w1g[:, c:c + 1] * row
                    z = a * gt
                    out = w2[:, 0:1] * z[0:1] + b2
                    for c in range(1, C):
                        out = out + w2[:, c:c + 1] * z[c:c + 1]

                # residual + learned per-channel scale (f32), lane-dense store
                o_ref[r0:r1, lane_idx] = (
                    out.astype(jnp.float32) * scale + xs).astype(o_ref.dtype)

        if n_chunks == 1:
            process(slice(None))
        else:
            # Inner lane-chunk loop: keeps the live set at ~SB*lane_chunk lanes
            # while the DMA block (and grid step) stays large.
            @pl.loop(0, n_chunks)
            def _(j):
                off = pl.multiple_of(j * lane_chunk, lane_chunk)
                process(pl.ds(off, lane_chunk))

    return kernel


def simple_gate(x_nchw, params, *, max_tile_p=16384,
                compute_dtype=_COMPUTE_DTYPE):
    """x_nchw: (N, C, H, W). Returns (N, C, H, W). Works on NCHW natively."""
    N, C, H, W = x_nchw.shape
    P = H * W
    dtype = x_nchw.dtype
    itemsize = jnp.dtype(dtype).itemsize
    use_mxu = C >= _MXU_MIN_C

    # ---- sublane layout ---------------------------------------------------
    packed = (C < 8) and (8 % C == 0) and ((N * C) % 8 == 0)
    if packed:
        SB, G = 8, 8 // C                 # G whole images per row block
        num_row_blocks = (N * C) // 8
    else:
        SB, G = C, 1                      # one image per row block (fallback)
        num_row_blocks = N

    # ---- pixel tiling -------------------------------------------------------
    # Budget the double-buffered in+out blocks so the same tiling is safe on
    # v7x's smaller VMEM; cap is a multiple of 128 lanes.
    cap = _TILE_BUDGET_BYTES // (4 * SB * itemsize)
    cap = max(128, (cap // 128) * 128)
    limit = min(max_tile_p, cap)          # multiple of 128
    tile_p = P if P <= limit else limit

    # Megacore guard (v7x has 2 TensorCores): ensure >= 2 grid steps when the
    # problem allows it.
    if num_row_blocks * pl.cdiv(P, tile_p) < 2 and P >= 256:
        tile_p = ((-(-P // 2)) + 127) // 128 * 128
    num_p_tiles = pl.cdiv(P, tile_p)

    # Inner chunk size: largest multiple-of-128 divisor of tile_p <= 1024.
    if tile_p <= _LANE_CHUNK:
        lane_chunk = tile_p
    else:
        lane_chunk = 0
        for cand in range(_LANE_CHUNK, 0, -128):
            if tile_p % cand == 0:
                lane_chunk = cand
                break
        if lane_chunk == 0:
            lane_chunk = tile_p
    n_chunks = tile_p // lane_chunk

    # ---- parameter packing (10 BlockSpecs -> 2) -----------------------------
    w1, b1 = params["w1"], params["b1"]                       # (2C, C), (2C, 1)
    pvec = jnp.concatenate(
        [params["ln_w"], params["ln_b"], b1[:C], b1[C:], params["b2"],
         params["scale"]], axis=1)                            # (C, 6)
    wcat = jnp.concatenate([w1, params["w2"]], axis=0)        # (3C, C)

    if packed:
        x_in = x_nchw.reshape(N * C, P)   # metadata-only reshape, no HBM pass
        x_spec = pl.BlockSpec((SB, tile_p), lambda i, p: (i, p))
        o_spec = pl.BlockSpec((SB, tile_p), lambda i, p: (i, p))
        out_shape = jax.ShapeDtypeStruct((N * C, P), dtype)
    else:
        x_in = x_nchw.reshape(N, C, P)
        x_spec = pl.BlockSpec((None, C, tile_p), lambda i, p: (i, 0, p))
        o_spec = pl.BlockSpec((None, C, tile_p), lambda i, p: (i, 0, p))
        out_shape = jax.ShapeDtypeStruct((N, C, P), dtype)

    pv_spec = pl.BlockSpec(pvec.shape, lambda i, p: (0, 0))
    w_spec = pl.BlockSpec(wcat.shape, lambda i, p: (0, 0))

    kernel = _make_kernel(C, G, lane_chunk, n_chunks, use_mxu, compute_dtype)

    out = pl.pallas_call(
        kernel,
        out_shape=out_shape,
        grid_spec=pltpu.PrefetchScalarGridSpec(
            num_scalar_prefetch=0,
            grid=(num_row_blocks, num_p_tiles),
            in_specs=[x_spec, pv_spec, w_spec],
            out_specs=o_spec,
        ),
        compiler_params=pltpu.CompilerParams(
            # Both grid axes are independent -> megacore-friendly on v7x.
            dimension_semantics=("parallel", "parallel"),
            vmem_limit_bytes=32 * 1024 * 1024,
        ),
    )(x_in, pvec, wcat)

    return out.reshape(N, C, H, W)


def init_params(n_feats, key):
    """Deterministic synthetic parameters (shapes match the torch module)."""
    i_feats = 2 * n_feats
    k1, k2, k3, k4, k5 = jax.random.split(key, 5)
    # Conv weights stored as (out_ch, in_ch) (torch's (O, I, 1, 1) squeezed);
    # per-channel vectors are (C, 1) columns.
    w1 = jax.random.normal(k1, (i_feats, n_feats), jnp.float32) * 0.1
    b1 = jax.random.normal(k2, (i_feats, 1), jnp.float32) * 0.1
    w2 = jax.random.normal(k3, (n_feats, n_feats), jnp.float32) * 0.1
    b2 = jax.random.normal(k4, (n_feats, 1), jnp.float32) * 0.1
    ln_w = jnp.ones((n_feats, 1), jnp.float32)      # PyTorch LayerNorm default
    ln_b = jnp.zeros((n_feats, 1), jnp.float32)
    # torch inits scale to zeros; use small nonzero values so the gated path
    # actually contributes (semantics identical: out = x*scale + shortcut).
    scale = jax.random.normal(k5, (n_feats, 1), jnp.float32) * 0.1
    return dict(ln_w=ln_w, ln_b=ln_b, w1=w1, b1=b1, w2=w2, b2=b2, scale=scale)


def simple_gate_ref(x, params):
    """Pure-JAX NCHW reference mirroring the PyTorch forward exactly."""
    C = x.shape[1]
    u = jnp.mean(x, axis=1, keepdims=True)
    s = jnp.mean((x - u) ** 2, axis=1, keepdims=True)
    xn = (x - u) / jnp.sqrt(s + EPS)
    xn = params["ln_w"].reshape(1, -1, 1, 1) * xn + params["ln_b"].reshape(1, -1, 1, 1)
    y = jnp.einsum("nchw,oc->nohw", xn, params["w1"]) + params["b1"].reshape(1, -1, 1, 1)
    a, g = y[:, :C], y[:, C:]
    z = g * a
    out = jnp.einsum("nchw,oc->nohw", z, params["w2"]) + params["b2"].reshape(1, -1, 1, 1)
    return out * params["scale"].reshape(1, -1, 1, 1) + x


if __name__ == "__main__":
    key = jax.random.PRNGKey(0)
    kx, kp = jax.random.split(key)

    # Required small config: batch=2, n_feats=4, 16x16 spatial.
    N, C, H, W = 2, 4, 16, 16
    x = jax.random.normal(kx, (N, C, H, W), jnp.float32)
    params = init_params(C, kp)

    out = jax.block_until_ready(simple_gate(x, params))
    ref = simple_gate_ref(x, params)
    assert out.shape == (N, C, H, W)
    assert jnp.allclose(out, ref, atol=1e-4, rtol=1e-4), "mismatch (packed path)"

    # Larger spatial: exercises the inner lane-chunk pl.loop (dynamic pl.ds).
    x2 = jax.random.normal(jax.random.PRNGKey(1), (2, 4, 64, 64), jnp.float32)
    out2 = jax.block_until_ready(simple_gate(x2, params))
    assert jnp.allclose(out2, simple_gate_ref(x2, params),
                        atol=1e-4, rtol=1e-4), "mismatch (chunked path)"

    # Odd batch: exercises the unpacked per-image fallback path.
    x3 = jax.random.normal(jax.random.PRNGKey(2), (3, 4, 16, 16), jnp.float32)
    out3 = jax.block_until_ready(simple_gate(x3, params))
    assert jnp.allclose(out3, simple_gate_ref(x3, params),
                        atol=1e-4, rtol=1e-4), "mismatch (fallback path)"

    print("KERNEL_OK")
</pallas_src>

<mosaic_0001>
module attributes {stable_mosaic.version = 11 : i64} {
  func.func @kernel(%arg0: i32, %arg1: i32, %arg2: memref<8x128xf32, #tpu.memory_space<vmem>>, %arg3: memref<4x6xf32, #tpu.memory_space<vmem>>, %arg4: memref<12x4xf32, #tpu.memory_space<vmem>>, %arg5: memref<8x128xf32, #tpu.memory_space<vmem>>) attributes {dimension_semantics = [#tpu.dimension_semantics<parallel>, #tpu.dimension_semantics<parallel>], iteration_bounds = array<i64: 1, 2>, scalar_prefetch = 0 : i64, scratch_operands = 0 : i64, tpu.core_type = #tpu.core_type<tc>, window_params = [{transform_indices = @transform_0, window_bounds = array<i64: 8, 128>}, {pipeline_mode = #tpu.pipeline_mode<synchronous>, transform_indices = @transform_1, window_bounds = array<i64: 4, 6>}, {pipeline_mode = #tpu.pipeline_mode<synchronous>, transform_indices = @transform_2, window_bounds = array<i64: 12, 4>}, {transform_indices = @transform_3, window_bounds = array<i64: 8, 128>}]} {
    %c0 = arith.constant 0 : index
    %c0_0 = arith.constant 0 : index
    %0 = vector.load %arg3[%c0, %c0_0] : memref<4x6xf32, #tpu.memory_space<vmem>>, vector<4x6xf32>
    %1 = vector.extract_strided_slice %0 {offsets = [0, 0], sizes = [4, 1], strides = [1, 1]} : vector<4x6xf32> to vector<4x1xf32>
    %2 = vector.extract_strided_slice %0 {offsets = [0, 1], sizes = [4, 1], strides = [1, 1]} : vector<4x6xf32> to vector<4x1xf32>
    %3 = vector.extract_strided_slice %0 {offsets = [0, 2], sizes = [4, 1], strides = [1, 1]} : vector<4x6xf32> to vector<4x1xf32>
    %4 = vector.extract_strided_slice %0 {offsets = [0, 3], sizes = [4, 1], strides = [1, 1]} : vector<4x6xf32> to vector<4x1xf32>
    %5 = vector.extract_strided_slice %0 {offsets = [0, 4], sizes = [4, 1], strides = [1, 1]} : vector<4x6xf32> to vector<4x1xf32>
    %6 = vector.extract_strided_slice %0 {offsets = [0, 5], sizes = [4, 1], strides = [1, 1]} : vector<4x6xf32> to vector<4x1xf32>
    %c0_1 = arith.constant 0 : index
    %c0_2 = arith.constant 0 : index
    %7 = vector.load %arg4[%c0_1, %c0_2] : memref<12x4xf32, #tpu.memory_space<vmem>>, vector<12x4xf32>
    %8 = vector.extract_strided_slice %7 {offsets = [0, 0], sizes = [4, 4], strides = [1, 1]} : vector<12x4xf32> to vector<4x4xf32>
    %9 = vector.extract_strided_slice %7 {offsets = [4, 0], sizes = [4, 4], strides = [1, 1]} : vector<12x4xf32> to vector<4x4xf32>
    %10 = vector.extract_strided_slice %7 {offsets = [8, 0], sizes = [4, 4], strides = [1, 1]} : vector<12x4xf32> to vector<4x4xf32>
    %c0_3 = arith.constant 0 : index
    %c0_4 = arith.constant 0 : index
    %11 = vector.load %arg2[%c0_3, %c0_4] : memref<8x128xf32, #tpu.memory_space<vmem>>, vector<4x128xf32>
    %cst = arith.constant dense<0.000000e+00> : vector<128xf32>
    %12 = vector.multi_reduction <add>, %11, %cst [0] : vector<4x128xf32> to vector<128xf32>
    %13 = vector.shape_cast %12 : vector<128xf32> to vector<1x128xf32>
    %cst_5 = arith.constant 4.000000e+00 : f32
    %14 = vector.broadcast %cst_5 : f32 to vector<1x128xf32>
    %15 = arith.divf %13, %14 : vector<1x128xf32>
    %16 = vector.broadcast %15 : vector<1x128xf32> to vector<4x128xf32>
    %17 = arith.subf %11, %16 : vector<4x128xf32>
    %18 = arith.mulf %17, %17 : vector<4x128xf32>
    %cst_6 = arith.constant dense<0.000000e+00> : vector<128xf32>
    %19 = vector.multi_reduction <add>, %18, %cst_6 [0] : vector<4x128xf32> to vector<128xf32>
    %20 = vector.shape_cast %19 : vector<128xf32> to vector<1x128xf32>
    %cst_7 = arith.constant 4.000000e+00 : f32
    %21 = vector.broadcast %cst_7 : f32 to vector<1x128xf32>
    %22 = arith.divf %20, %21 : vector<1x128xf32>
    %cst_8 = arith.constant 9.99999997E-7 : f32
    %23 = vector.broadcast %cst_8 : f32 to vector<1x128xf32>
    %24 = arith.addf %22, %23 : vector<1x128xf32>
    %25 = math.rsqrt %24 : vector<1x128xf32>
    %26 = vector.broadcast %25 : vector<1x128xf32> to vector<4x128xf32>
    %27 = arith.mulf %17, %26 : vector<4x128xf32>
    %28 = vector.broadcast %1 : vector<4x1xf32> to vector<4x128xf32>
    %29 = arith.mulf %27, %28 : vector<4x128xf32>
    %30 = vector.broadcast %2 : vector<4x1xf32> to vector<4x128xf32>
    %31 = arith.addf %29, %30 : vector<4x128xf32>
    %32 = vector.extract_strided_slice %31 {offsets = [0, 0], sizes = [1, 128], strides = [1, 1]} : vector<4x128xf32> to vector<1x128xf32>
    %33 = vector.extract_strided_slice %8 {offsets = [0, 0], sizes = [4, 1], strides = [1, 1]} : vector<4x4xf32> to vector<4x1xf32>
    %34 = vector.broadcast %33 : vector<4x1xf32> to vector<4x128xf32>
    %35 = vector.broadcast %32 : vector<1x128xf32> to vector<4x128xf32>
    %36 = arith.mulf %34, %35 : vector<4x128xf32>
    %37 = vector.broadcast %3 : vector<4x1xf32> to vector<4x128xf32>
    %38 = arith.addf %36, %37 : vector<4x128xf32>
    %39 = vector.extract_strided_slice %9 {offsets = [0, 0], sizes = [4, 1], strides = [1, 1]} : vector<4x4xf32> to vector<4x1xf32>
    %40 = vector.broadcast %39 : vector<4x1xf32> to vector<4x128xf32>
    %41 = vector.broadcast %32 : vector<1x128xf32> to vector<4x128xf32>
    %42 = arith.mulf %40, %41 : vector<4x128xf32>
    %43 = vector.broadcast %4 : vector<4x1xf32> to vector<4x128xf32>
    %44 = arith.addf %42, %43 : vector<4x128xf32>
    %45 = vector.extract_strided_slice %31 {offsets = [1, 0], sizes = [1, 128], strides = [1, 1]} : vector<4x128xf32> to vector<1x128xf32>
    %46 = vector.extract_strided_slice %8 {offsets = [0, 1], sizes = [4, 1], strides = [1, 1]} : vector<4x4xf32> to vector<4x1xf32>
    %47 = vector.broadcast %46 : vector<4x1xf32> to vector<4x128xf32>
    %48 = vector.broadcast %45 : vector<1x128xf32> to vector<4x128xf32>
    %49 = arith.mulf %47, %48 : vector<4x128xf32>
    %50 = arith.addf %38, %49 : vector<4x128xf32>
    %51 = vector.extract_strided_slice %9 {offsets = [0, 1], sizes = [4, 1], strides = [1, 1]} : vector<4x4xf32> to vector<4x1xf32>
    %52 = vector.broadcast %51 : vector<4x1xf32> to vector<4x128xf32>
    %53 = vector.broadcast %45 : vector<1x128xf32> to vector<4x128xf32>
    %54 = arith.mulf %52, %53 : vector<4x128xf32>
    %55 = arith.addf %44, %54 : vector<4x128xf32>
    %56 = vector.extract_strided_slice %31 {offsets = [2, 0], sizes = [1, 128], strides = [1, 1]} : vector<4x128xf32> to vector<1x128xf32>
    %57 = vector.extract_strided_slice %8 {offsets = [0, 2], sizes = [4, 1], strides = [1, 1]} : vector<4x4xf32> to vector<4x1xf32>
    %58 = vector.broadcast %57 : vector<4x1xf32> to vector<4x128xf32>
    %59 = vector.broadcast %56 : vector<1x128xf32> to vector<4x128xf32>
    %60 = arith.mulf %58, %59 : vector<4x128xf32>
    %61 = arith.addf %50, %60 : vector<4x128xf32>
    %62 = vector.extract_strided_slice %9 {offsets = [0, 2], sizes = [4, 1], strides = [1, 1]} : vector<4x4xf32> to vector<4x1xf32>
    %63 = vector.broadcast %62 : vector<4x1xf32> to vector<4x128xf32>
    %64 = vector.broadcast %56 : vector<1x128xf32> to vector<4x128xf32>
    %65 = arith.mulf %63, %64 : vector<4x128xf32>
    %66 = arith.addf %55, %65 : vector<4x128xf32>
    %67 = vector.extract_strided_slice %31 {offsets = [3, 0], sizes = [1, 128], strides = [1, 1]} : vector<4x128xf32> to vector<1x128xf32>
    %68 = vector.extract_strided_slice %8 {offsets = [0, 3], sizes = [4, 1], strides = [1, 1]} : vector<4x4xf32> to vector<4x1xf32>
    %69 = vector.broadcast %68 : vector<4x1xf32> to vector<4x128xf32>
    %70 = vector.broadcast %67 : vector<1x128xf32> to vector<4x128xf32>
    %71 = arith.mulf %69, %70 : vector<4x128xf32>
    %72 = arith.addf %61, %71 : vector<4x128xf32>
    %73 = vector.extract_strided_slice %9 {offsets = [0, 3], sizes = [4, 1], strides = [1, 1]} : vector<4x4xf32> to vector<4x1xf32>
    %74 = vector.broadcast %73 : vector<4x1xf32> to vector<4x128xf32>
    %75 = vector.broadcast %67 : vector<1x128xf32> to vector<4x128xf32>
    %76 = arith.mulf %74, %75 : vector<4x128xf32>
    %77 = arith.addf %66, %76 : vector<4x128xf32>
    %78 = arith.mulf %72, %77 : vector<4x128xf32>
    %79 = vector.extract_strided_slice %10 {offsets = [0, 0], sizes = [4, 1], strides = [1, 1]} : vector<4x4xf32> to vector<4x1xf32>
    %80 = vector.extract_strided_slice %78 {offsets = [0, 0], sizes = [1, 128], strides = [1, 1]} : vector<4x128xf32> to vector<1x128xf32>
    %81 = vector.broadcast %79 : vector<4x1xf32> to vector<4x128xf32>
    %82 = vector.broadcast %80 : vector<1x128xf32> to vector<4x128xf32>
    %83 = arith.mulf %81, %82 : vector<4x128xf32>
    %84 = vector.broadcast %5 : vector<4x1xf32> to vector<4x128xf32>
    %85 = arith.addf %83, %84 : vector<4x128xf32>
    %86 = vector.extract_strided_slice %10 {offsets = [0, 1], sizes = [4, 1], strides = [1, 1]} : vector<4x4xf32> to vector<4x1xf32>
    %87 = vector.extract_strided_slice %78 {offsets = [1, 0], sizes = [1, 128], strides = [1, 1]} : vector<4x128xf32> to vector<1x128xf32>
    %88 = vector.broadcast %86 : vector<4x1xf32> to vector<4x128xf32>
    %89 = vector.broadcast %87 : vector<1x128xf32> to vector<4x128xf32>
    %90 = arith.mulf %88, %89 : vector<4x128xf32>
    %91 = arith.addf %85, %90 : vector<4x128xf32>
    %92 = vector.extract_strided_slice %10 {offsets = [0, 2], sizes = [4, 1], strides = [1, 1]} : vector<4x4xf32> to vector<4x1xf32>
    %93 = vector.extract_strided_slice %78 {offsets = [2, 0], sizes = [1, 128], strides = [1, 1]} : vector<4x128xf32> to vector<1x128xf32>
    %94 = vector.broadcast %92 : vector<4x1xf32> to vector<4x128xf32>
    %95 = vector.broadcast %93 : vector<1x128xf32> to vector<4x128xf32>
    %96 = arith.mulf %94, %95 : vector<4x128xf32>
    %97 = arith.addf %91, %96 : vector<4x128xf32>
    %98 = vector.extract_strided_slice %10 {offsets = [0, 3], sizes = [4, 1], strides = [1, 1]} : vector<4x4xf32> to vector<4x1xf32>
    %99 = vector.extract_strided_slice %78 {offsets = [3, 0], sizes = [1, 128], strides = [1, 1]} : vector<4x128xf32> to vector<1x128xf32>
    %100 = vector.broadcast %98 : vector<4x1xf32> to vector<4x128xf32>
    %101 = vector.broadcast %99 : vector<1x128xf32> to vector<4x128xf32>
    %102 = arith.mulf %100, %101 : vector<4x128xf32>
    %103 = arith.addf %97, %102 : vector<4x128xf32>
    %104 = vector.broadcast %6 : vector<4x1xf32> to vector<4x128xf32>
    %105 = arith.mulf %103, %104 : vector<4x128xf32>
    %106 = arith.addf %105, %11 : vector<4x128xf32>
    %c0_9 = arith.constant 0 : index
    %c0_10 = arith.constant 0 : index
    %107 = vector.load %arg5[%c0_9, %c0_10] : memref<8x128xf32, #tpu.memory_space<vmem>>, vector<4x128xf32>
    tpu.vector_store %arg5[%c0_9, %c0_10], %106 {strides = array<i32>} : memref<8x128xf32, #tpu.memory_space<vmem>>, vector<4x128xf32>,
    %c4 = arith.constant 4 : index
    %c0_11 = arith.constant 0 : index
    %108 = vector.load %arg2[%c4, %c0_11] : memref<8x128xf32, #tpu.memory_space<vmem>>, vector<4x128xf32>
    %cst_12 = arith.constant dense<0.000000e+00> : vector<128xf32>
    %109 = vector.multi_reduction <add>, %108, %cst_12 [0] : vector<4x128xf32> to vector<128xf32>
    %110 = vector.shape_cast %109 : vector<128xf32> to vector<1x128xf32>
    %cst_13 = arith.constant 4.000000e+00 : f32
    %111 = vector.broadcast %cst_13 : f32 to vector<1x128xf32>
    %112 = arith.divf %110, %111 : vector<1x128xf32>
    %113 = vector.broadcast %112 : vector<1x128xf32> to vector<4x128xf32>
    %114 = arith.subf %108, %113 : vector<4x128xf32>
    %115 = arith.mulf %114, %114 : vector<4x128xf32>
    %cst_14 = arith.constant dense<0.000000e+00> : vector<128xf32>
    %116 = vector.multi_reduction <add>, %115, %cst_14 [0] : vector<4x128xf32> to vector<128xf32>
    %117 = vector.shape_cast %116 : vector<128xf32> to vector<1x128xf32>
    %cst_15 = arith.constant 4.000000e+00 : f32
    %118 = vector.broadcast %cst_15 : f32 to vector<1x128xf32>
    %119 = arith.divf %117, %118 : vector<1x128xf32>
    %cst_16 = arith.constant 9.99999997E-7 : f32
    %120 = vector.broadcast %cst_16 : f32 to vector<1x128xf32>
    %121 = arith.addf %119, %120 : vector<1x128xf32>
    %122 = math.rsqrt %121 : vector<1x128xf32>
    %123 = vector.broadcast %122 : vector<1x128xf32> to vector<4x128xf32>
    %124 = arith.mulf %114, %123 : vector<4x128xf32>
    %125 = vector.broadcast %1 : vector<4x1xf32> to vector<4x128xf32>
    %126 = arith.mulf %124, %125 : vector<4x128xf32>
    %127 = vector.broadcast %2 : vector<4x1xf32> to vector<4x128xf32>
    %128 = arith.addf %126, %127 : vector<4x128xf32>
    %129 = vector.extract_strided_slice %128 {offsets = [0, 0], sizes = [1, 128], strides = [1, 1]} : vector<4x128xf32> to vector<1x128xf32>
    %130 = vector.extract_strided_slice %8 {offsets = [0, 0], sizes = [4, 1], strides = [1, 1]} : vector<4x4xf32> to vector<4x1xf32>
    %131 = vector.broadcast %130 : vector<4x1xf32> to vector<4x128xf32>
    %132 = vector.broadcast %129 : vector<1x128xf32> to vector<4x128xf32>
    %133 = arith.mulf %131, %132 : vector<4x128xf32>
    %134 = vector.broadcast %3 : vector<4x1xf32> to vector<4x128xf32>
    %135 = arith.addf %133, %134 : vector<4x128xf32>
    %136 = vector.extract_strided_slice %9 {offsets = [0, 0], sizes = [4, 1], strides = [1, 1]} : vector<4x4xf32> to vector<4x1xf32>
    %137 = vector.broadcast %136 : vector<4x1xf32> to vector<4x128xf32>
    %138 = vector.broadcast %129 : vector<1x128xf32> to vector<4x128xf32>
    %139 = arith.mulf %137, %138 : vector<4x128xf32>
    %140 = vector.broadcast %4 : vector<4x1xf32> to vector<4x128xf32>
    %141 = arith.addf %139, %140 : vector<4x128xf32>
    %142 = vector.extract_strided_slice %128 {offsets = [1, 0], sizes = [1, 128], strides = [1, 1]} : vector<4x128xf32> to vector<1x128xf32>
    %143 = vector.extract_strided_slice %8 {offsets = [0, 1], sizes = [4, 1], strides = [1, 1]} : vector<4x4xf32> to vector<4x1xf32>
    %144 = vector.broadcast %143 : vector<4x1xf32> to vector<4x128xf32>
    %145 = vector.broadcast %142 : vector<1x128xf32> to vector<4x128xf32>
    %146 = arith.mulf %144, %145 : vector<4x128xf32>
    %147 = arith.addf %135, %146 : vector<4x128xf32>
    %148 = vector.extract_strided_slice %9 {offsets = [0, 1], sizes = [4, 1], strides = [1, 1]} : vector<4x4xf32> to vector<4x1xf32>
    %149 = vector.broadcast %148 : vector<4x1xf32> to vector<4x128xf32>
    %150 = vector.broadcast %142 : vector<1x128xf32> to vector<4x128xf32>
    %151 = arith.mulf %149, %150 : vector<4x128xf32>
    %152 = arith.addf %141, %151 : vector<4x128xf32>
    %153 = vector.extract_strided_slice %128 {offsets = [2, 0], sizes = [1, 128], strides = [1, 1]} : vector<4x128xf32> to vector<1x128xf32>
    %154 = vector.extract_strided_slice %8 {offsets = [0, 2], sizes = [4, 1], strides = [1, 1]} : vector<4x4xf32> to vector<4x1xf32>
    %155 = vector.broadcast %154 : vector<4x1xf32> to vector<4x128xf32>
    %156 = vector.broadcast %153 : vector<1x128xf32> to vector<4x128xf32>
    %157 = arith.mulf %155, %156 : vector<4x128xf32>
    %158 = arith.addf %147, %157 : vector<4x128xf32>
    %159 = vector.extract_strided_slice %9 {offsets = [0, 2], sizes = [4, 1], strides = [1, 1]} : vector<4x4xf32> to vector<4x1xf32>
    %160 = vector.broadcast %159 : vector<4x1xf32> to vector<4x128xf32>
    %161 = vector.broadcast %153 : vector<1x128xf32> to vector<4x128xf32>
    %162 = arith.mulf %160, %161 : vector<4x128xf32>
    %163 = arith.addf %152, %162 : vector<4x128xf32>
    %164 = vector.extract_strided_slice %128 {offsets = [3, 0], sizes = [1, 128], strides = [1, 1]} : vector<4x128xf32> to vector<1x128xf32>
    %165 = vector.extract_strided_slice %8 {offsets = [0, 3], sizes = [4, 1], strides = [1, 1]} : vector<4x4xf32> to vector<4x1xf32>
    %166 = vector.broadcast %165 : vector<4x1xf32> to vector<4x128xf32>
    %167 = vector.broadcast %164 : vector<1x128xf32> to vector<4x128xf32>
    %168 = arith.mulf %166, %167 : vector<4x128xf32>
    %169 = arith.addf %158, %168 : vector<4x128xf32>
    %170 = vector.extract_strided_slice %9 {offsets = [0, 3], sizes = [4, 1], strides = [1, 1]} : vector<4x4xf32> to vector<4x1xf32>
    %171 = vector.broadcast %170 : vector<4x1xf32> to vector<4x128xf32>
    %172 = vector.broadcast %164 : vector<1x128xf32> to vector<4x128xf32>
    %173 = arith.mulf %171, %172 : vector<4x128xf32>
    %174 = arith.addf %163, %173 : vector<4x128xf32>
    %175 = arith.mulf %169, %174 : vector<4x128xf32>
    %176 = vector.extract_strided_slice %10 {offsets = [0, 0], sizes = [4, 1], strides = [1, 1]} : vector<4x4xf32> to vector<4x1xf32>
    %177 = vector.extract_strided_slice %175 {offsets = [0, 0], sizes = [1, 128], strides = [1, 1]} : vector<4x128xf32> to vector<1x128xf32>
    %178 = vector.broadcast %176 : vector<4x1xf32> to vector<4x128xf32>
    %179 = vector.broadcast %177 : vector<1x128xf32> to vector<4x128xf32>
    %180 = arith.mulf %178, %179 : vector<4x128xf32>
    %181 = vector.broadcast %5 : vector<4x1xf32> to vector<4x128xf32>
    %182 = arith.addf %180, %181 : vector<4x128xf32>
    %183 = vector.extract_strided_slice %10 {offsets = [0, 1], sizes = [4, 1], strides = [1, 1]} : vector<4x4xf32> to vector<4x1xf32>
    %184 = vector.extract_strided_slice %175 {offsets = [1, 0], sizes = [1, 128], strides = [1, 1]} : vector<4x128xf32> to vector<1x128xf32>
    %185 = vector.broadcast %183 : vector<4x1xf32> to vector<4x128xf32>
    %186 = vector.broadcast %184 : vector<1x128xf32> to vector<4x128xf32>
    %187 = arith.mulf %185, %186 : vector<4x128xf32>
    %188 = arith.addf %182, %187 : vector<4x128xf32>
    %189 = vector.extract_strided_slice %10 {offsets = [0, 2], sizes = [4, 1], strides = [1, 1]} : vector<4x4xf32> to vector<4x1xf32>
    %190 = vector.extract_strided_slice %175 {offsets = [2, 0], sizes = [1, 128], strides = [1, 1]} : vector<4x128xf32> to vector<1x128xf32>
    %191 = vector.broadcast %189 : vector<4x1xf32> to vector<4x128xf32>
    %192 = vector.broadcast %190 : vector<1x128xf32> to vector<4x128xf32>
    %193 = arith.mulf %191, %192 : vector<4x128xf32>
    %194 = arith.addf %188, %193 : vector<4x128xf32>
    %195 = vector.extract_strided_slice %10 {offsets = [0, 3], sizes = [4, 1], strides = [1, 1]} : vector<4x4xf32> to vector<4x1xf32>
    %196 = vector.extract_strided_slice %175 {offsets = [3, 0], sizes = [1, 128], strides = [1, 1]} : vector<4x128xf32> to vector<1x128xf32>
    %197 = vector.broadcast %195 : vector<4x1xf32> to vector<4x128xf32>
    %198 = vector.broadcast %196 : vector<1x128xf32> to vector<4x128xf32>
    %199 = arith.mulf %197, %198 : vector<4x128xf32>
    %200 = arith.addf %194, %199 : vector<4x128xf32>
    %201 = vector.broadcast %6 : vector<4x1xf32> to vector<4x128xf32>
    %202 = arith.mulf %200, %201 : vector<4x128xf32>
    %203 = arith.addf %202, %108 : vector<4x128xf32>
    %c4_17 = arith.constant 4 : index
    %c0_18 = arith.constant 0 : index
    %204 = vector.load %arg5[%c4_17, %c0_18] : memref<8x128xf32, #tpu.memory_space<vmem>>, vector<4x128xf32>
    tpu.vector_store %arg5[%c4_17, %c0_18], %203 {strides = array<i32>} : memref<8x128xf32, #tpu.memory_space<vmem>>, vector<4x128xf32>,
    return
  }
  func.func @transform_0(%arg0: i32, %arg1: i32) -> (i32, i32) {
    %c0_i32 = arith.constant 0 : i32
    return %arg0, %arg1 : i32, i32
  }
  func.func @transform_1(%arg0: i32, %arg1: i32) -> (i32, i32) {
    %c0_i32 = arith.constant 0 : i32
    %c0_i32_0 = arith.constant 0 : i32
    %c0_i32_1 = arith.constant 0 : i32
    return %c0_i32, %c0_i32_0 : i32, i32
  }
  func.func @transform_2(%arg0: i32, %arg1: i32) -> (i32, i32) {
    %c0_i32 = arith.constant 0 : i32
    %c0_i32_0 = arith.constant 0 : i32
    %c0_i32_1 = arith.constant 0 : i32
    return %c0_i32, %c0_i32_0 : i32, i32
  }
  func.func @transform_3(%arg0: i32, %arg1: i32) -> (i32, i32) {
    %c0_i32 = arith.constant 0 : i32
    return %arg0, %arg1 : i32, i32
  }
}

</mosaic_0001>

<llo_original>
// kernel: tpu_custom_call.1
$region0: #{tpu_custom_call.1}
  #allocation0 [shape = 'u32[]', space=smem, size = 0x4, offset = 0x4, fixed_abs, tag = 'smem constant byte address 0x4 - core index']
  #allocation1 [shape = 'u32[144,128]{1,0:T(1,128)}', space=vmem, size = 0x12000, scoped, tag = 'internal scratch']
  %s0 = inlined_call_operand.vmem [shape: f32[8,256], index: 0, kind: input, shape index: {}]
  %s1 = inlined_call_operand.vmem [shape: f32[4,6], index: 1, kind: input, shape index: {}]
  %s2 = inlined_call_operand.vmem [shape: f32[12,4], index: 2, kind: input, shape index: {}]
  %s3 = inlined_call_operand.hbm [shape: f32[8,256], index: 3, kind: output, shape index: {}]
  %s4 = sld [smem:[#allocation0]]
  $region45: #{tpu_custom_call.1} parent=0
    _
  %s6 = ssub.s32 1, %s4
  %s7 = scalar_select 0, %s6, %s4
  $region1: #{tpu_custom_call.1} parent=0
    #allocation2 [shape = 'u8[8192]{0}', space=vmem, size = 0x2000, scoped, tag = 'output window, operand 0']
    #allocation3 [shape = 's32[2]{0}', space=sflag, size = 0x8, scoped, tag = 'scoped memory for tpu_custom_call.1']
    %8 = vsyncpa [#allocation3], 0
    %s9 = scalar_lea.sflag [#allocation3], 1
    %10 = vsyncpa %s9, 0
    loop: start=0, step=1, limit=4
    $region2: #{tpu_custom_call.1} parent=1 // loop_pre_header
      _
    $region3: #{tpu_custom_call.1} parent=1 // loop_header
      %s12 = sphi 0, %s16
      %p13 = scmp.ge.s32.totalorder %s12, 4
      %s19 = sphi 0, %s31
      %s20 = sphi 0, %s27
      %s21 = sphi 0, %s19
      %s22 = sphi 0, %s20
      %s23 = sphi 0, %s21
      %s24 = sphi 0, %s22
      %s36 = sphi 0, %s38
      %s39 = sphi 0, %s36
      %s40 = sphi 0, %s39
      %s56 = sphi 0, %s40
      %s60 = sphi 0, %s60
      %s62 = sphi 0, %s60
      %s63 = sphi 0, %s62
      %s77 = sphi 0, %s63
      %s81 = sphi 0, %s81
      %s83 = sphi 0, %s81
      %s84 = sphi 0, %s83
      %s98 = sphi 0, %s84
      %s106 = sphi 0, %s108
      %s109 = sphi 0, %s106
      %s110 = sphi 0, %s109
      %s126 = sphi 0, %s110
    $region4: #{tpu_custom_call.1} parent=1 // loop_header_branch
      %15 = sbr.rel (%p13) target = $region8
    $region5: #{tpu_custom_call.1} parent=1 // loop_body
      %s17 = ssub.s32 %s12, 1
      %s18 = ssub.s32 %s12, 2
      %s25 = sadd.s32 1, %s20
      %p26 = scmp.ge.s32.totalorder %s25, 2
      %s27 = scalar_select %p26, 0, %s25
      %s28 = sadd.s32 1, %s19
      %s29 = scalar_select %p26, %s28, %s19
      %p30 = scmp.ge.s32.totalorder %s29, 1
      %s31 = scalar_select %p30, 0, %s29
      %s32 = ssub.s32 %s19, %s31
      %s33 = ssub.s32 %s20, %s27
      %s34 = sor.u32 %s32, %s33
      %p35 = scmp.eq.s32.totalorder %s34, 0
      %s37 = sadd.s32 %s36, 1
      %s38 = scalar_select %p35, %s36, %s37
      %p41 = pneg %p35
      %p42 = scmp.eq.s32.totalorder %s12, 1
      %p43 = por %p41, %p42
      %p44 = scmp.ne.s32.totalorder %s36, %s39
      %p45 = scmp.eq.s32.totalorder %s12, 0
      %p46 = por %p44, %p45
      %p47 = scmp.ne.s32.totalorder %s36, %s39
      %p48 = scmp.eq.s32.totalorder %s17, 1
      %p49 = por %p47, %p48
      %p50 = scmp.ne.s32.totalorder %s39, %s40
      %p51 = scmp.eq.s32.totalorder %s17, 0
      %p52 = por %p50, %p51
      %p53 = scmp.ne.s32.totalorder %s39, %s40
      %p54 = scmp.eq.s32.totalorder %s18, 1
      %p55 = por %p53, %p54
      %p57 = scmp.ne.s32.totalorder %s40, %s56
      %p58 = scmp.eq.s32.totalorder %s18, 0
      %p59 = por %p57, %p58
      %s61 = sadd.s32 %s60, 1
      %p64 = scmp.eq.s32.totalorder %s12, 1
      %p65 = scmp.ne.s32.totalorder %s60, %s62
      %p66 = scmp.eq.s32.totalorder %s12, 0
      %p67 = por %p65, %p66
      %p68 = scmp.ne.s32.totalorder %s60, %s62
      %p69 = scmp.eq.s32.totalorder %s17, 1
      %p70 = por %p68, %p69
      %p71 = scmp.ne.s32.totalorder %s62, %s63
      %p72 = scmp.eq.s32.totalorder %s17, 0
      %p73 = por %p71, %p72
      %p74 = scmp.ne.s32.totalorder %s62, %s63
      %p75 = scmp.eq.s32.totalorder %s18, 1
      %p76 = por %p74, %p75
      %p78 = scmp.ne.s32.totalorder %s63, %s77
      %p79 = scmp.eq.s32.totalorder %s18, 0
      %p80 = por %p78, %p79
      %s82 = sadd.s32 %s81, 1
      %p85 = scmp.eq.s32.totalorder %s12, 1
      %p86 = scmp.ne.s32.totalorder %s81, %s83
      %p87 = scmp.eq.s32.totalorder %s12, 0
      %p88 = por %p86, %p87
      %p89 = scmp.ne.s32.totalorder %s81, %s83
      %p90 = scmp.eq.s32.totalorder %s17, 1
      %p91 = por %p89, %p90
      %p92 = scmp.ne.s32.totalorder %s83, %s84
      %p93 = scmp.eq.s32.totalorder %s17, 0
      %p94 = por %p92, %p93
      %p95 = scmp.ne.s32.totalorder %s83, %s84
      %p96 = scmp.eq.s32.totalorder %s18, 1
      %p97 = por %p95, %p96
      %p99 = scmp.ne.s32.totalorder %s84, %s98
      %p100 = scmp.eq.s32.totalorder %s18, 0
      %p101 = por %p99, %p100
      %s102 = ssub.s32 %s19, %s31
      %s103 = ssub.s32 %s20, %s27
      %s104 = sor.u32 %s102, %s103
      %p105 = scmp.eq.s32.totalorder %s104, 0
      %s107 = sadd.s32 %s106, 1
      %s108 = scalar_select %p105, %s106, %s107
      %p111 = pneg %p105
      %p112 = scmp.eq.s32.totalorder %s12, 1
      %p113 = por %p111, %p112
      %p114 = scmp.ne.s32.totalorder %s106, %s109
      %p115 = scmp.eq.s32.totalorder %s12, 0
      %p116 = por %p114, %p115
      %p117 = scmp.ne.s32.totalorder %s106, %s109
      %p118 = scmp.eq.s32.totalorder %s17, 1
      %p119 = por %p117, %p118
      %p120 = scmp.ne.s32.totalorder %s109, %s110
      %p121 = scmp.eq.s32.totalorder %s17, 0
      %p122 = por %p120, %p121
      %p123 = scmp.ne.s32.totalorder %s109, %s110
      %p124 = scmp.eq.s32.totalorder %s18, 1
      %p125 = por %p123, %p124
      %p127 = scmp.ne.s32.totalorder %s110, %s126
      %p128 = scmp.eq.s32.totalorder %s18, 0
      %p129 = por %p127, %p128
      %p130 = scmp.le.s32.totalorder 1, %s12
      %p131 = scmp.lt.s32.totalorder %s12, 3
      %p132 = pnand %p130, %p131
      %p133 = pneg %p132
      // Predicated region
      $region9: #{tpu_custom_call.1} parent=5 // pred_check
        _
      $region10: #{tpu_custom_call.1} parent=5 // pred_check_branch
        %135 = sbr.rel (%p132) target = $region12
      $region11: #{tpu_custom_call.1} parent=5 // pred_region
        %s136 = ssub.s32 %s12, 1
        // Predicated region
        $region13: #{tpu_custom_call.1} parent=11 // pred_check
          %p137 = pneg %p73
        $region14: #{tpu_custom_call.1} parent=11 // pred_check_branch
          %139 = sbr.rel (%p137) target = $region16
        $region15: #{tpu_custom_call.1} parent=11 // pred_region
          _
        $region16: #{tpu_custom_call.1} parent=11 // pred_fallthru
          _
        // Predicated region
        $region17: #{tpu_custom_call.1} parent=11 // pred_check
          %p140 = pneg %p94
        $region18: #{tpu_custom_call.1} parent=11 // pred_check_branch
          %142 = sbr.rel (%p140) target = $region20
        $region19: #{tpu_custom_call.1} parent=11 // pred_region
          _
        $region20: #{tpu_custom_call.1} parent=11 // pred_fallthru
          _
      $region12: #{tpu_custom_call.1} parent=5 // pred_fallthru
        _
      %p143 = scmp.lt.s32.totalorder %s12, 2
      // Predicated region
      $region21: #{tpu_custom_call.1} parent=5 // pred_check
        %p144 = pneg %p143
      $region22: #{tpu_custom_call.1} parent=5 // pred_check_branch
        %146 = sbr.rel (%p144) target = $region24
      $region23: #{tpu_custom_call.1} parent=5 // pred_region
        // Predicated region
        $region25: #{tpu_custom_call.1} parent=23 // pred_check
          %p147 = pneg %p46
        $region26: #{tpu_custom_call.1} parent=23 // pred_check_branch
          %149 = sbr.rel (%p147) target = $region28
        $region27: #{tpu_custom_call.1} parent=23 // pred_region
          %p150 = scmp.lt.s32.totalorder %s19, 0
          %s151 = scalar_select %p150, %s19, 0
          %p152 = scmp.lt.s32.totalorder %s20, 1
          %s153 = scalar_select %p152, %s20, 1
          %s154 = smul.addr %s151, 2
          %s155 = sadd.s32 %s153, %s154
          %s156 = smul.addr %s155, 8
          %s157 = scalar_lea.vmem %s0, %s156
        $region28: #{tpu_custom_call.1} parent=23 // pred_fallthru
          _
      $region24: #{tpu_custom_call.1} parent=5 // pred_fallthru
        _
      %p158 = scmp.le.s32.totalorder 1, %s12
      %p159 = scmp.lt.s32.totalorder %s12, 3
      %p160 = pnand %p158, %p159
      %p161 = pneg %p160
      // Predicated region
      $region29: #{tpu_custom_call.1} parent=5 // pred_check
        _
      $region30: #{tpu_custom_call.1} parent=5 // pred_check_branch
        %163 = sbr.rel (%p160) target = $region32
      $region31: #{tpu_custom_call.1} parent=5 // pred_region
        %s164 = ssub.s32 %s12, 1
        %p165 = scmp.lt.s32.totalorder %s21, 0
        %s166 = scalar_select %p165, %s21, 0
        %p167 = scmp.lt.s32.totalorder %s22, 1
        %s168 = scalar_select %p167, %s22, 1
        %s169 = smul.addr %s166, 2
        %s170 = sadd.s32 %s168, %s169
        %s171 = smul.addr %s170, 8
        %s172 = scalar_lea.vmem %s0, %s171
        %p173 = pneg %p52
        %p174 = pneg %p49
        %p175 = pneg %p73
        %p176 = pneg %p70
        %p177 = pneg %p94
        %p178 = pneg %p91
        %p179 = pneg %p122
        %p180 = pneg %p119
        %s181 = sand.u32 %s109, 1
        %s182 = scalar_lea.sflag [#allocation3], %s181
        %s183 = sand.u32 %s109, 1
        %s184 = smul.addr %s183, 8
        %s185 = scalar_lea.vmem [#allocation2], %s184
        %p186 = scmp.lt.s32.totalorder %s21, 0
        %s187 = scalar_select %p186, %s21, 0
        %p188 = scmp.lt.s32.totalorder %s22, 1
        %s189 = scalar_select %p188, %s22, 1
        %s190 = smul.addr %s187, 2
        %s191 = sadd.s32 %s189, %s190
        %s192 = smul.addr %s191, 8
        %s193 = scalar_lea.vmem %s0, %s192
        %v194 = vld [vmem:[%s1] sm:$0xf]
        %v195 = vld [vmem:[%s2] sm:$0xff]
        %v196 = vld [vmem:[%s2 + $0x8] sm:$0xf]
        %v197 = vld [vmem:[%s193] sm:$0xf]
        %vm198 = vcmask 1043456
        %v199 = vsel %vm198, %v197, 0.0
        %v200 = vrot.slane %v199, 4
        %v201 = vadd.f32 %v199, %v200
        %v202 = vrot.slane %v201, 2
        %v203 = vadd.f32 %v201, %v202
        %v204 = vrot.slane %v203, 1
        %v205 = vadd.f32 %v203, %v204
        %v206 = vrcp.pop 4.0
        %v207 = vmul.f32 %v205, %v206
        %v208 = vsub.f32 %v197, %v207
        %v209 = vmul.f32 %v208, %v208
        %v210 = vsel %vm198, %v209, 0.0
        %v211 = vrot.slane %v210, 4
        %v212 = vadd.f32 %v210, %v211
        %v213 = vrot.slane %v212, 2
        %v214 = vadd.f32 %v212, %v213
        %v215 = vrot.slane %v214, 1
        %v216 = vadd.f32 %v214, %v215
        %v217 = vmul.f32 %v216, %v206
        %v218 = vadd.f32 %v217, 1e-06
        %v219 = vrsqrt.pop %v218
        %v220 = vmul.f32 %v208, %v219
        %222 = vset.pattern.permute.xlu0 0
        %223 = vperm.xlu0 %222, %v194
        %v224 = vpop.permute.xlu0 %223
        %v226 = vmul.f32 %v220, %v224
        %227 = vset.pattern.permute.xlu0 1
        %228 = vperm.xlu0 %227, %v194
        %v229 = vpop.permute.xlu0 %228
        %v231 = vadd.f32 %v226, %v229
        %233 = vset.pattern.permute.xlu0 0
        %234 = vperm.xlu0 %233, %v195
        %v235 = vpop.permute.xlu0 %234
        %v237 = vlaneseq
        %v238 = vshrl.u32 %v237, 7
        %v239 = vsub.s32 0, %v238
        %v240 = vrot.slane %v231, %v239
        %v241 = vmul.f32 %v235, %v240
        %242 = vset.pattern.permute.xlu0 2
        %243 = vperm.xlu0 %242, %v194
        %v244 = vpop.permute.xlu0 %243
        %v246 = vadd.f32 %v241, %v244
        %247 = vset.pattern.permute.xlu0 3
        %248 = vperm.xlu0 %247, %v194
        %v249 = vpop.permute.xlu0 %248
        %v250 = vrot.slane %v249, 4
        %v252 = vadd.f32 %v241, %v250
        %253 = vset.pattern.permute.xlu0 1
        %254 = vperm.xlu0 %253, %v195
        %v255 = vpop.permute.xlu0 %254
        %v257 = vlaneseq
        %v258 = vshrl.u32 %v257, 7
        %v259 = vsub.s32 1, %v258
        %v260 = vrot.slane %v231, %v259
        %v261 = vmul.f32 %v255, %v260
        %v262 = vadd.f32 %v246, %v261
        %v263 = vadd.f32 %v252, %v261
        %264 = vset.pattern.permute.xlu0 2
        %265 = vperm.xlu0 %264, %v195
        %v266 = vpop.permute.xlu0 %265
        %v268 = vlaneseq
        %v269 = vshrl.u32 %v268, 7
        %v270 = vsub.s32 2, %v269
        %v271 = vrot.slane %v231, %v270
        %v272 = vmul.f32 %v266, %v271
        %v273 = vadd.f32 %v262, %v272
        %v274 = vadd.f32 %v263, %v272
        %275 = vset.pattern.permute.xlu0 3
        %276 = vperm.xlu0 %275, %v195
        %v277 = vpop.permute.xlu0 %276
        %v279 = vlaneseq
        %v280 = vshrl.u32 %v279, 7
        %v281 = vsub.s32 3, %v280
        %v282 = vrot.slane %v231, %v281
        %v283 = vmul.f32 %v277, %v282
        %v284 = vadd.f32 %v273, %v283
        %v285 = vadd.f32 %v274, %v283
        %v287 = vrot.slane %v285, 4
        %v289 = vmul.f32 %v284, %v287
        %291 = vset.pattern.permute.xlu0 0
        %292 = vperm.xlu0 %291, %v196
        %v293 = vpop.permute.xlu0 %292
        %v295 = vlaneseq
        %v296 = vshrl.u32 %v295, 7
        %v297 = vsub.s32 0, %v296
        %v298 = vrot.slane %v289, %v297
        %v299 = vmul.f32 %v293, %v298
        %300 = vset.pattern.permute.xlu0 4
        %301 = vperm.xlu0 %300, %v194
        %v302 = vpop.permute.xlu0 %301
        %v304 = vadd.f32 %v299, %v302
        %305 = vset.pattern.permute.xlu0 1
        %306 = vperm.xlu0 %305, %v196
        %v307 = vpop.permute.xlu0 %306
        %v309 = vlaneseq
        %v310 = vshrl.u32 %v309, 7
        %v311 = vsub.s32 1, %v310
        %v312 = vrot.slane %v289, %v311
        %v313 = vmul.f32 %v307, %v312
        %v314 = vadd.f32 %v304, %v313
        %315 = vset.pattern.permute.xlu0 2
        %316 = vperm.xlu0 %315, %v196
        %v317 = vpop.permute.xlu0 %316
        %v319 = vlaneseq
        %v320 = vshrl.u32 %v319, 7
        %v321 = vsub.s32 2, %v320
        %v322 = vrot.slane %v289, %v321
        %v323 = vmul.f32 %v317, %v322
        %v324 = vadd.f32 %v314, %v323
        %325 = vset.pattern.permute.xlu0 3
        %326 = vperm.xlu0 %325, %v196
        %v327 = vpop.permute.xlu0 %326
        %v329 = vlaneseq
        %v330 = vshrl.u32 %v329, 7
        %v331 = vsub.s32 3, %v330
        %v332 = vrot.slane %v289, %v331
        %v333 = vmul.f32 %v327, %v332
        %v334 = vadd.f32 %v324, %v333
        %335 = vset.pattern.permute.xlu0 5
        %336 = vperm.xlu0 %335, %v194
        %v337 = vpop.permute.xlu0 %336
        %v339 = vmul.f32 %v334, %v337
        %v340 = vadd.f32 %v339, %v197
        %341 = vst [vmem:[%s185] sm:$0xf] %v340
        %v342 = vld [vmem:[%s193 + $0x4] sm:$0xf]
        %v343 = vsel %vm198, %v342, 0.0
        %v344 = vrot.slane %v343, 4
        %v345 = vadd.f32 %v343, %v344
        %v346 = vrot.slane %v345, 2
        %v347 = vadd.f32 %v345, %v346
        %v348 = vrot.slane %v347, 1
        %v349 = vadd.f32 %v347, %v348
        %v350 = vmul.f32 %v349, %v206
        %v351 = vsub.f32 %v342, %v350
        %v352 = vmul.f32 %v351, %v351
        %v353 = vsel %vm198, %v352, 0.0
        %v354 = vrot.slane %v353, 4
        %v355 = vadd.f32 %v353, %v354
        %v356 = vrot.slane %v355, 2
        %v357 = vadd.f32 %v355, %v356
        %v358 = vrot.slane %v357, 1
        %v359 = vadd.f32 %v357, %v358
        %v360 = vmul.f32 %v359, %v206
        %v361 = vadd.f32 %v360, 1e-06
        %v362 = vrsqrt.pop %v361
        %v363 = vmul.f32 %v351, %v362
        %v364 = vmul.f32 %v363, %v224
        %v365 = vadd.f32 %v364, %v229
        %v366 = vlaneseq
        %v367 = vshrl.u32 %v366, 7
        %v368 = vsub.s32 0, %v367
        %v369 = vrot.slane %v365, %v368
        %v370 = vmul.f32 %v235, %v369
        %v371 = vadd.f32 %v370, %v244
        %v372 = vadd.f32 %v370, %v250
        %v373 = vlaneseq
        %v374 = vshrl.u32 %v373, 7
        %v375 = vsub.s32 1, %v374
        %v376 = vrot.slane %v365, %v375
        %v377 = vmul.f32 %v255, %v376
        %v378 = vadd.f32 %v371, %v377
        %v379 = vadd.f32 %v372, %v377
        %v380 = vlaneseq
        %v381 = vshrl.u32 %v380, 7
        %v382 = vsub.s32 2, %v381
        %v383 = vrot.slane %v365, %v382
        %v384 = vmul.f32 %v266, %v383
        %v385 = vadd.f32 %v378, %v384
        %v386 = vadd.f32 %v379, %v384
        %v387 = vlaneseq
        %v388 = vshrl.u32 %v387, 7
        %v389 = vsub.s32 3, %v388
        %v390 = vrot.slane %v365, %v389
        %v391 = vmul.f32 %v277, %v390
        %v392 = vadd.f32 %v385, %v391
        %v393 = vadd.f32 %v386, %v391
        %v395 = vrot.slane %v393, 4
        %v397 = vmul.f32 %v392, %v395
        %v398 = vlaneseq
        %v399 = vshrl.u32 %v398, 7
        %v400 = vsub.s32 0, %v399
        %v401 = vrot.slane %v397, %v400
        %v402 = vmul.f32 %v293, %v401
        %v403 = vadd.f32 %v402, %v302
        %v404 = vlaneseq
        %v405 = vshrl.u32 %v404, 7
        %v406 = vsub.s32 1, %v405
        %v407 = vrot.slane %v397, %v406
        %v408 = vmul.f32 %v307, %v407
        %v409 = vadd.f32 %v403, %v408
        %v410 = vlaneseq
        %v411 = vshrl.u32 %v410, 7
        %v412 = vsub.s32 2, %v411
        %v413 = vrot.slane %v397, %v412
        %v414 = vmul.f32 %v317, %v413
        %v415 = vadd.f32 %v409, %v414
        %v416 = vlaneseq
        %v417 = vshrl.u32 %v416, 7
        %v418 = vsub.s32 3, %v417
        %v419 = vrot.slane %v397, %v418
        %v420 = vmul.f32 %v327, %v419
        %v421 = vadd.f32 %v415, %v420
        %v422 = vmul.f32 %v421, %v337
        %v423 = vadd.f32 %v422, %v342
        %424 = vst [vmem:[%s185 + $0x4] sm:$0xf] %v423
        %s425 = sand.u32 %s109, 1
        %s426 = scalar_lea.sflag [#allocation3], %s425
        %s427 = sand.u32 %s109, 1
        %s428 = smul.addr %s427, 8
        %s429 = scalar_lea.vmem [#allocation2], %s428
        // Predicated region
        $region33: #{tpu_custom_call.1} parent=31 // pred_check
          %p430 = pneg %p119
        $region34: #{tpu_custom_call.1} parent=31 // pred_check_branch
          %432 = sbr.rel (%p430) target = $region36
        $region35: #{tpu_custom_call.1} parent=31 // pred_region
          %s434 = ssub.s32 128, 128
          %435 = vsyncadd %s426, %s434
          %s436 = smul.addr %s21, 2
          %s437 = sadd.s32 %s22, %s436
          %s438 = smul.addr %s437, 128
          %s439 = scalar_lea.hbm %s3, %s438
          %s441 = sshll.u32 %s429, 4
          %s442 = int_to_ptr.vmem [resolvable:$true] %s441
          %444 = dma.vmem_to_hbm [thread:$0]  %s442, 128, %s439, %s426
        $region36: #{tpu_custom_call.1} parent=31 // pred_fallthru
          _
      $region32: #{tpu_custom_call.1} parent=5 // pred_fallthru
        _
      %p445 = scmp.le.s32.totalorder 2, %s12
      // Predicated region
      $region37: #{tpu_custom_call.1} parent=5 // pred_check
        %p446 = pneg %p445
      $region38: #{tpu_custom_call.1} parent=5 // pred_check_branch
        %448 = sbr.rel (%p446) target = $region40
      $region39: #{tpu_custom_call.1} parent=5 // pred_region
        %s449 = ssub.s32 %s12, 2
        // Predicated region
        $region41: #{tpu_custom_call.1} parent=39 // pred_check
          %p450 = pneg %p125
        $region42: #{tpu_custom_call.1} parent=39 // pred_check_branch
          %452 = sbr.rel (%p450) target = $region44
        $region43: #{tpu_custom_call.1} parent=39 // pred_region
          %s453 = sand.u32 %s110, 1
          %s454 = scalar_lea.sflag [#allocation3], %s453
          %s455 = sand.u32 %s110, 1
          %s456 = smul.addr %s455, 8
          %s457 = scalar_lea.vmem [#allocation2], %s456
          %458 = dma.done %s454, 128
        $region44: #{tpu_custom_call.1} parent=39 // pred_fallthru
          _
      $region40: #{tpu_custom_call.1} parent=5 // pred_fallthru
        _
    $region6: #{tpu_custom_call.1} parent=1 // loop_footer
      %s16 = sadd.s32 1, %s12
    $region7: #{tpu_custom_call.1} parent=1 // loop_footer_branch
      %11 = sbr.rel target = $region3
    $region8: #{tpu_custom_call.1} parent=1 // loop_exit
      _
    %459 = vsyncpa [#allocation3], 1
    %s460 = scalar_lea.sflag [#allocation3], 1
    %461 = vsyncpa %s460, 1

</llo_original>
